<compile_context>
chip_gen: v7x
topology: tpu7x:2x2x1
jax: 0.10.0
libtpu: 0.0.40
codegen_flags: <defaults>
</compile_context>

<pallas_src>
import functools
import math

import jax
import jax.numpy as jnp
from jax import lax
from jax.experimental import pallas as pl
from jax.experimental.pallas import tpu as pltpu


_LANE = 128
_SUBLANE = 8
_MAX_TN = 2048                       # lane-dense block width cap (multiple of 128)
_MAX_TM = 512                        # row cap per block
_BLOCK_BYTES = 4 * 1024 * 1024       # per-input block budget (post-restructure)
_VMEM_LIMIT = 32 * 1024 * 1024       # safe on v5e / v6e / v7x
_MIN_KERNEL_ELEMS = 1024             # below this, pallas_call overhead dominates


def _recon_loss_kernel(pred_ref, true_ref, mag_out, phase_out, *,
                       eps, C, R, N, gr, n_groups,
                       need_row_mask, need_col_mask,
                       out_rows, out_cols, unroll):
    tm, tn = pred_ref.shape
    ri = pl.program_id(0)
    ci = pl.program_id(1)

    # (gr, 1) row index.  Tiling guarantees (ri*tm + g*gr) % C == 0, so the
    # channel-0 selector depends only on the row index within a group and is
    # hoisted out of the group loop (no full-block iota / mod / compare).
    row_ids = lax.broadcasted_iota(jnp.int32, (gr, 1), 0)
    is_mag = (row_ids % C) == 0
    is_phase = jnp.logical_not(is_mag)

    if need_col_mask:                  # only when N is not exactly tiled
        col_ok = (ci * tn + lax.broadcasted_iota(jnp.int32, (1, tn), 1)) < N
    if need_row_mask:                  # only when R is not exactly tiled
        row_base = ri * tm

    def fold(x):
        """(gr, tn) -> (out_rows, out_cols) using vreg-aligned VPU adds only."""
        if out_cols < tn:
            acc = x[:, 0:out_cols]
            for j in range(1, tn // out_cols):
                acc = acc + x[:, j * out_cols:(j + 1) * out_cols]
        else:
            acc = x
        if out_rows < gr:
            red = acc[0:out_rows, :]
            for r in range(1, gr // out_rows):
                red = red + acc[r * out_rows:(r + 1) * out_rows, :]
        else:
            red = acc
        return red

    def group(g, mag_acc, phase_acc):
        if n_groups == 1:
            p = pred_ref[...].astype(jnp.float32)              # (gr, tn)
            t = true_ref[...].astype(jnp.float32)
        else:
            r0 = pl.multiple_of(g * gr, _SUBLANE)              # sublane-aligned
            p = pred_ref[pl.ds(r0, gr), :].astype(jnp.float32)
            t = true_ref[pl.ds(r0, gr), :].astype(jnp.float32)

        diff = jnp.abs(p - t)
        # torch.clamp(min=eps) then divide -> max + EUP reciprocal + multiply.
        inv = pl.reciprocal(jnp.maximum(t, jnp.float32(eps)), approx=True)

        mag_m, phase_m = is_mag, is_phase
        if need_row_mask:
            row_ok = (row_base + g * gr + row_ids) < R          # (gr, 1)
            mag_m = jnp.logical_and(mag_m, row_ok)
            phase_m = jnp.logical_and(phase_m, row_ok)
        if need_col_mask:
            mag_m = jnp.logical_and(mag_m, col_ok)              # (gr, tn)
            phase_m = jnp.logical_and(phase_m, col_ok)

        # jnp.where (not multiply-by-selector) so padded-garbage NaN/inf never
        # leaks into the sums.
        mag_acc = mag_acc + fold(jnp.where(mag_m, diff * inv, 0.0))
        phase_acc = phase_acc + fold(jnp.where(phase_m, diff, 0.0))
        return mag_acc, phase_acc

    zeros = jnp.zeros((out_rows, out_cols), jnp.float32)
    if n_groups == 1:
        mag_acc, phase_acc = group(0, zeros, zeros)
    else:
        mag_acc, phase_acc = lax.fori_loop(
            0, n_groups, lambda g, c: group(g, *c), (zeros, zeros),
            unroll=unroll)

    mag_out[...] = mag_acc
    phase_out[...] = phase_acc


def _pure_jax_loss(y_pred, y_true, w1, w2, eps):
    """Reference / fallback path mirroring the PyTorch module exactly."""
    t0 = y_true[:, 0].astype(jnp.float32)
    p0 = y_pred[:, 0].astype(jnp.float32)
    mag = jnp.float32(w1) * jnp.mean(jnp.abs(p0 - t0) / jnp.maximum(t0, eps))
    ph = jnp.float32(w2) * jnp.mean(
        jnp.abs(y_pred[:, 1:].astype(jnp.float32)
                - y_true[:, 1:].astype(jnp.float32)))
    return mag, ph, mag + ph


def _choose_col_tile(N):
    """Prefer a lane-dense tile that divides N exactly (no edge mask)."""
    if N <= _MAX_TN:
        return N, True                              # full minor dim, exact
    for cand in range(_MAX_TN, _LANE - 1, -_LANE):  # multiples of 128
        if N % cand == 0:
            return cand, True
    return _MAX_TN, False                           # edge mask on last col tile


def reconstruction_loss(y_pred, y_true, *, w1, w2, epsilon=0.001):
    """JAX/Pallas equivalent of ReconstructionLoss.forward.

    Returns (log_magnitude_loss, phase_loss, rec_loss) as float32 scalars.
    """
    assert y_pred.shape == y_true.shape
    B, C, H, W = y_pred.shape
    assert C >= 2, "need a magnitude channel plus at least one phase channel"

    R, N = B * C, H * W

    # Tiny inputs: kernel launch + pipeline warmup dominates; stay in pure JAX.
    if R * N < _MIN_KERNEL_ELEMS:
        return _pure_jax_loss(y_pred, y_true, w1, w2, epsilon)

    pred2 = y_pred.reshape(R, N)       # free reshape of contiguous NCHW
    true2 = y_true.reshape(R, N)
    itemsize = jnp.dtype(y_pred.dtype).itemsize

    # ---- column tile ----
    tn, col_exact = _choose_col_tile(N)

    # ---- row tile / group size ----
    gr = (8 * C) // math.gcd(8, C)     # lcm(8, C): static channel-0 mask
    rows_budget = min(_MAX_TM, max(_SUBLANE, _BLOCK_BYTES // (tn * itemsize)))
    if gr > rows_budget:
        # TODO(synk): pathological channel count; static-mask tiling impossible.
        return _pure_jax_loss(y_pred, y_true, w1, w2, epsilon)

    if R <= rows_budget and R % gr == 0:
        tm = R                                            # exact, full rows
    elif R < gr:
        tm = R                                            # tiny: one whole-block group
        gr = R                                            # (R % C == 0, row 0 is ch 0)
    else:
        tm = min(rows_budget, ((R + gr - 1) // gr) * gr)
        tm = (tm // gr) * gr                              # multiple of lcm(8, C)
    n_groups = tm // gr
    row_exact = (R % tm == 0)

    out_rows = _SUBLANE if gr % _SUBLANE == 0 else gr
    out_cols = _LANE if tn % _LANE == 0 else tn

    n_row_tiles = pl.cdiv(R, tm)
    n_col_tiles = pl.cdiv(N, tn)

    kernel = functools.partial(
        _recon_loss_kernel,
        eps=float(epsilon), C=C, R=R, N=N, gr=gr, n_groups=n_groups,
        need_row_mask=not row_exact, need_col_mask=not col_exact,
        out_rows=out_rows, out_cols=out_cols, unroll=min(4, n_groups))

    mag_partials, phase_partials = pl.pallas_call(
        kernel,
        grid=(n_row_tiles, n_col_tiles),
        in_specs=[
            pl.BlockSpec((tm, tn), lambda ri, ci: (ri, ci)),
            pl.BlockSpec((tm, tn), lambda ri, ci: (ri, ci)),
        ],
        out_specs=[
            pl.BlockSpec((out_rows, out_cols), lambda ri, ci: (ri, ci)),
            pl.BlockSpec((out_rows, out_cols), lambda ri, ci: (ri, ci)),
        ],
        out_shape=[
            jax.ShapeDtypeStruct(
                (n_row_tiles * out_rows, n_col_tiles * out_cols), jnp.float32),
            jax.ShapeDtypeStruct(
                (n_row_tiles * out_rows, n_col_tiles * out_cols), jnp.float32),
        ],
        compiler_params=pltpu.CompilerParams(
            dimension_semantics=("parallel", "parallel"),
            vmem_limit_bytes=_VMEM_LIMIT,
        ),
    )(pred2, true2)

    # Tiny final reduction outside the kernel (partials are a few KiB).
    mag_mean = jnp.sum(mag_partials) / jnp.float32(B * H * W)
    phase_mean = jnp.sum(phase_partials) / jnp.float32(B * (C - 1) * H * W)

    log_magnitude_loss = jnp.float32(w1) * mag_mean
    phase_loss = jnp.float32(w2) * phase_mean
    rec_loss = log_magnitude_loss + phase_loss
    return log_magnitude_loss, phase_loss, rec_loss


if __name__ == "__main__":
    # The module's only state is (w1, w2, epsilon); there are no learned weights.
    W1, W2, EPS = 10.0, 1.0, 0.001

    key = jax.random.PRNGKey(0)

    # Exercise the main tiling paths: exact tiling, multi-group fori_loop,
    # odd channel count / non-128 minor dim, column edge mask, row edge mask.
    shapes = [
        (2, 4, 16, 16),    # primary small shape (exact tiling, single group)
        (8, 4, 32, 32),    # multi-group fori_loop path
        (2, 3, 20, 20),    # C=3, tiny R, minor dim not a multiple of 128
        (1, 2, 50, 70),    # N > tile and N % 128 != 0 -> column edge mask
        (65, 8, 16, 16),   # R > row budget -> row edge mask, 64-group loop
    ]

    for shape in shapes:
        k_pred, k_true, key = jax.random.split(key, 3)
        y_pred = jax.random.normal(k_pred, shape, dtype=jnp.float32)
        y_true = jax.random.normal(k_true, shape, dtype=jnp.float32)

        out = reconstruction_loss(y_pred, y_true, w1=W1, w2=W2, epsilon=EPS)
        out = jax.block_until_ready(out)

        ref = _pure_jax_loss(y_pred, y_true, W1, W2, EPS)
        # pl.reciprocal(approx=True) shifts results at the ~1e-3 relative level.
        for got, want in zip(out, ref):
            assert jnp.allclose(got, want, rtol=5e-3, atol=1e-3), (shape, got, want)

    print("KERNEL_OK")
</pallas_src>

<mosaic_0001>
module attributes {stable_mosaic.version = 11 : i64} {
  func.func @_recon_loss_kernel(%arg0: i32, %arg1: i32, %arg2: memref<8x256xf32, #tpu.memory_space<vmem>>, %arg3: memref<8x256xf32, #tpu.memory_space<vmem>>, %arg4: memref<8x128xf32, #tpu.memory_space<vmem>>, %arg5: memref<8x128xf32, #tpu.memory_space<vmem>>) attributes {dimension_semantics = [#tpu.dimension_semantics<parallel>, #tpu.dimension_semantics<parallel>], iteration_bounds = array<i64: 1, 1>, scalar_prefetch = 0 : i64, scratch_operands = 0 : i64, tpu.core_type = #tpu.core_type<tc>, window_params = [{transform_indices = @transform_0, window_bounds = array<i64: 8, 256>}, {transform_indices = @transform_1, window_bounds = array<i64: 8, 256>}, {transform_indices = @transform_2, window_bounds = array<i64: 8, 128>}, {transform_indices = @transform_3, window_bounds = array<i64: 8, 128>}]} {
    %0 = tpu.iota {dimensions = array<i32: 0>} : vector<8x1xi32>
    %c4_i32 = arith.constant 4 : i32
    %c0_i32 = arith.constant 0 : i32
    %1 = arith.cmpi eq, %c4_i32, %c0_i32 : i32
    %c1_i32 = arith.constant 1 : i32
    %2 = arith.select %1, %c1_i32, %c4_i32 : i32
    %3 = vector.broadcast %2 : i32 to vector<8x1xi32>
    %4 = arith.remsi %0, %3 : vector<8x1xi32>
    %c0_i32_0 = arith.constant 0 : i32
    %5 = vector.broadcast %c0_i32_0 : i32 to vector<8x1xi32>
    %6 = arith.cmpi ne, %4, %5 : vector<8x1xi32>
    %c0_i32_1 = arith.constant 0 : i32
    %7 = vector.broadcast %c0_i32_1 : i32 to vector<8x1xi32>
    %8 = arith.cmpi slt, %4, %7 : vector<8x1xi32>
    %c0_i32_2 = arith.constant 0 : i32
    %9 = arith.cmpi slt, %2, %c0_i32_2 : i32
    %10 = vector.broadcast %9 : i1 to vector<8x1xi1>
    %11 = vector.broadcast %10 : vector<8x1xi1> to vector<8x1xi1>
    %12 = arith.xori %8, %11 : vector<8x1xi1>
    %13 = arith.andi %12, %6 : vector<8x1xi1>
    %14 = vector.broadcast %2 : i32 to vector<8x1xi32>
    %15 = arith.addi %4, %14 : vector<8x1xi32>
    %16 = arith.select %13, %15, %4 : vector<8x1xi1>, vector<8x1xi32>
    %c0_i32_3 = arith.constant 0 : i32
    %17 = vector.broadcast %c0_i32_3 : i32 to vector<8x1xi32>
    %18 = arith.cmpi eq, %16, %17 : vector<8x1xi32>
    %cst = arith.constant dense<true> : vector<8x1xi1>
    %19 = arith.xori %18, %cst : vector<8x1xi1>
    %cst_4 = arith.constant 0.000000e+00 : f32
    %20 = vector.broadcast %cst_4 : f32 to vector<8x128xf32>
    %c0 = arith.constant 0 : index
    %c0_5 = arith.constant 0 : index
    %21 = vector.load %arg2[%c0, %c0_5] : memref<8x256xf32, #tpu.memory_space<vmem>>, vector<8x256xf32>
    %c0_6 = arith.constant 0 : index
    %c0_7 = arith.constant 0 : index
    %22 = vector.load %arg3[%c0_6, %c0_7] : memref<8x256xf32, #tpu.memory_space<vmem>>, vector<8x256xf32>
    %23 = arith.subf %21, %22 : vector<8x256xf32>
    %24 = math.absf %23 : vector<8x256xf32>
    %cst_8 = arith.constant 1.000000e-03 : f32
    %25 = vector.broadcast %cst_8 : f32 to vector<8x256xf32>
    %26 = arith.maximumf %22, %25 : vector<8x256xf32>
    %27 = tpu.reciprocal %26 {approx = true} : vector<8x256xf32> -> vector<8x256xf32>
    %28 = arith.mulf %24, %27 : vector<8x256xf32>
    %cst_9 = arith.constant 0.000000e+00 : f32
    %29 = vector.shape_cast %18 : vector<8x1xi1> to vector<8x1xi1>
    %30 = vector.broadcast %29 : vector<8x1xi1> to vector<8x256xi1>
    %31 = vector.broadcast %cst_9 : f32 to vector<8x256xf32>
    %32 = arith.select %30, %28, %31 : vector<8x256xi1>, vector<8x256xf32>
    %33 = vector.extract_strided_slice %32 {offsets = [0, 0], sizes = [8, 128], strides = [1, 1]} : vector<8x256xf32> to vector<8x128xf32>
    %34 = vector.extract_strided_slice %32 {offsets = [0, 128], sizes = [8, 128], strides = [1, 1]} : vector<8x256xf32> to vector<8x128xf32>
    %35 = arith.addf %33, %34 : vector<8x128xf32>
    %36 = arith.addf %20, %35 : vector<8x128xf32>
    %cst_10 = arith.constant 0.000000e+00 : f32
    %37 = vector.shape_cast %19 : vector<8x1xi1> to vector<8x1xi1>
    %38 = vector.broadcast %37 : vector<8x1xi1> to vector<8x256xi1>
    %39 = vector.broadcast %cst_10 : f32 to vector<8x256xf32>
    %40 = arith.select %38, %24, %39 : vector<8x256xi1>, vector<8x256xf32>
    %41 = vector.extract_strided_slice %40 {offsets = [0, 0], sizes = [8, 128], strides = [1, 1]} : vector<8x256xf32> to vector<8x128xf32>
    %42 = vector.extract_strided_slice %40 {offsets = [0, 128], sizes = [8, 128], strides = [1, 1]} : vector<8x256xf32> to vector<8x128xf32>
    %43 = arith.addf %41, %42 : vector<8x128xf32>
    %44 = arith.addf %20, %43 : vector<8x128xf32>
    %c0_11 = arith.constant 0 : index
    %c0_12 = arith.constant 0 : index
    %45 = vector.load %arg4[%c0_11, %c0_12] : memref<8x128xf32, #tpu.memory_space<vmem>>, vector<8x128xf32>
    tpu.vector_store %arg4[%c0_11, %c0_12], %36 {strides = array<i32>} : memref<8x128xf32, #tpu.memory_space<vmem>>, vector<8x128xf32>,
    %c0_13 = arith.constant 0 : index
    %c0_14 = arith.constant 0 : index
    %46 = vector.load %arg5[%c0_13, %c0_14] : memref<8x128xf32, #tpu.memory_space<vmem>>, vector<8x128xf32>
    tpu.vector_store %arg5[%c0_13, %c0_14], %44 {strides = array<i32>} : memref<8x128xf32, #tpu.memory_space<vmem>>, vector<8x128xf32>,
    return
  }
  func.func @transform_0(%arg0: i32, %arg1: i32) -> (i32, i32) {
    %c0_i32 = arith.constant 0 : i32
    return %arg0, %arg1 : i32, i32
  }
  func.func @transform_1(%arg0: i32, %arg1: i32) -> (i32, i32) {
    %c0_i32 = arith.constant 0 : i32
    return %arg0, %arg1 : i32, i32
  }
  func.func @transform_2(%arg0: i32, %arg1: i32) -> (i32, i32) {
    %c0_i32 = arith.constant 0 : i32
    return %arg0, %arg1 : i32, i32
  }
  func.func @transform_3(%arg0: i32, %arg1: i32) -> (i32, i32) {
    %c0_i32 = arith.constant 0 : i32
    return %arg0, %arg1 : i32, i32
  }
}

</mosaic_0001>

<llo_original>
// kernel: tpu_custom_call.1
$region0: #{tpu_custom_call.1}
  #allocation0 [shape = 'u32[]', space=smem, size = 0x4, offset = 0x4, fixed_abs, tag = 'smem constant byte address 0x4 - core index']
  #allocation1 [shape = 'u32[144,128]{1,0:T(1,128)}', space=vmem, size = 0x12000, scoped, tag = 'internal scratch']
  %s0 = inlined_call_operand.hbm [shape: f32[8,256], index: 0, kind: input, shape index: {}]
  %s1 = inlined_call_operand.hbm [shape: f32[8,256], index: 1, kind: input, shape index: {}]
  %s2 = inlined_call_operand.hbm [shape: f32[8,128], index: 2, kind: output, shape index: {0}]
  %s3 = inlined_call_operand.hbm [shape: f32[8,128], index: 3, kind: output, shape index: {1}]
  %4 = xla_tuple %s2, %s3
  %s5 = sld [smem:[#allocation0]]
  $region34: #{tpu_custom_call.1} parent=0
    _
  %s7 = ssub.s32 1, %s5
  %s8 = scalar_select 0, %s7, %s5
  $region1: #{tpu_custom_call.1} parent=0
    #allocation2 [shape = 'u8[8192]{0}', space=vmem, size = 0x2000, scoped, tag = 'input window, operand 0, single buffered']
    #allocation3 [shape = 's32[1]{0}', space=sflag, size = 0x4, scoped, tag = 'scoped memory for tpu_custom_call.1']
    #allocation4 [shape = 's32[1]{0}', space=sflag, size = 0x4, scoped, tag = 'scoped memory for tpu_custom_call.1']
    #allocation5 [shape = 'u8[8192]{0}', space=vmem, size = 0x2000, scoped, tag = 'input window, operand 1, single buffered']
    #allocation6 [shape = 's32[1]{0}', space=sflag, size = 0x4, scoped, tag = 'scoped memory for tpu_custom_call.1']
    #allocation7 [shape = 'u8[4096]{0}', space=vmem, size = 0x1000, scoped, tag = 'output window, operand 0, single buffered']
    #allocation8 [shape = 'u8[4096]{0}', space=vmem, size = 0x1000, scoped, tag = 'output window, operand 1, single buffered']
    #allocation9 [shape = 's32[1]{0}', space=sflag, size = 0x4, scoped, tag = 'scoped memory for tpu_custom_call.1']
    %9 = vsyncpa [#allocation3], 0
    %10 = vsyncpa [#allocation6], 0
    %11 = vsyncpa [#allocation4], 0
    %12 = vsyncpa [#allocation9], 0
    // Predicated region
    $region2: #{tpu_custom_call.1} parent=1 // pred_check
      _
    $region3: #{tpu_custom_call.1} parent=1 // pred_check_branch
      %14 = sbr.rel (0) target = $region5
    $region4: #{tpu_custom_call.1} parent=1 // pred_region
      %s16 = ssub.s32 256, 256
      %17 = vsyncadd [#allocation3], %s16
      %s19 = sshll.u32 [#allocation2], 4
      %s20 = int_to_ptr.vmem [resolvable:$true] %s19
      %22 = dma.hbm_to_vmem [thread:$0]  %s0, 256, %s20, [#allocation3]
    $region5: #{tpu_custom_call.1} parent=1 // pred_fallthru
      _
    // Predicated region
    $region6: #{tpu_custom_call.1} parent=1 // pred_check
      _
    $region7: #{tpu_custom_call.1} parent=1 // pred_check_branch
      %24 = sbr.rel (0) target = $region9
    $region8: #{tpu_custom_call.1} parent=1 // pred_region
      %s26 = ssub.s32 256, 256
      %27 = vsyncadd [#allocation6], %s26
      %s29 = sshll.u32 [#allocation5], 4
      %s30 = int_to_ptr.vmem [resolvable:$true] %s29
      %32 = dma.hbm_to_vmem [thread:$0]  %s1, 256, %s30, [#allocation6]
    $region9: #{tpu_custom_call.1} parent=1 // pred_fallthru
      _
    // Predicated region
    $region10: #{tpu_custom_call.1} parent=1 // pred_check
      _
    $region11: #{tpu_custom_call.1} parent=1 // pred_check_branch
      %34 = sbr.rel (0) target = $region13
    $region12: #{tpu_custom_call.1} parent=1 // pred_region
      %35 = dma.done [#allocation3], 256
    $region13: #{tpu_custom_call.1} parent=1 // pred_fallthru
      _
    // Predicated region
    $region14: #{tpu_custom_call.1} parent=1 // pred_check
      _
    $region15: #{tpu_custom_call.1} parent=1 // pred_check_branch
      %37 = sbr.rel (0) target = $region17
    $region16: #{tpu_custom_call.1} parent=1 // pred_region
      %38 = dma.done [#allocation6], 256
    $region17: #{tpu_custom_call.1} parent=1 // pred_fallthru
      _
    %v39 = vlaneseq
    %v40 = vshrl.u32 %v39, 7
    %vm41 = vcmp.lt.s32.totalorder %v40, 0
    %v42 = vsub.s32 0, %v40
    %v43 = vsel %vm41, %v42, %v40
    %v44 = vshrl.u32 %v43, 2
    %v45 = vand.u32 %v43, 3
    %v46 = vsub.s32 0, %v45
    %v47 = vsel %vm41, %v46, %v45
    %vm48 = vcmp.ne.s32.totalorder %v47, 0
    %vm49 = vcmp.lt.s32.totalorder %v47, 0
    %vm50 = vmand %vm49, %vm48
    %v51 = vadd.s32 %v47, 4
    %v52 = vsel %vm50, %v51, %v47
    %vm53 = vcmp.eq.s32.totalorder %v52, 0
    %vm54 = vmxor %vm53, 1
    %v55 = vld [vmem:[#allocation2] sm:$0xff]
    %v56 = vld [vmem:[#allocation2 + $0x8] sm:$0xff]
    %v57 = vld [vmem:[#allocation5] sm:$0xff]
    %v58 = vld [vmem:[#allocation5 + $0x8] sm:$0xff]
    %v59 = vsub.f32 %v55, %v57
    %v60 = vsub.f32 %v56, %v58
    %v61 = vand.u32 2147483647, %v59
    %v62 = vand.u32 2147483647, %v60
    %v63 = vmax.f32 %v57, 0.001
    %v64 = vmax.f32 %v58, 0.001
    %v65 = vrcp.pop %v63
    %v66 = vrcp.pop %v64
    %v67 = vmul.f32 %v61, %v65
    %v68 = vmul.f32 %v62, %v66
    %v69 = vsel %vm53, 1, 0
    %vm70 = vcmp.eq.s32.totalorder %v69, 1
    %v71 = vsel %vm70, %v67, 0.0
    %v72 = vsel %vm70, %v68, 0.0
    %v73 = vadd.f32 %v71, %v72
    %v74 = vadd.f32 %v73, 0.0
    %v75 = vsel %vm54, 1, 0
    %vm76 = vcmp.eq.s32.totalorder %v75, 1
    %v77 = vsel %vm76, %v61, 0.0
    %v78 = vsel %vm76, %v62, 0.0
    %v79 = vadd.f32 %v77, %v78
    %v80 = vadd.f32 %v79, 0.0
    %81 = vst [vmem:[#allocation7] sm:$0xff] %v74
    %82 = vst [vmem:[#allocation8] sm:$0xff] %v80
    // Predicated region
    $region18: #{tpu_custom_call.1} parent=1 // pred_check
      _
    $region19: #{tpu_custom_call.1} parent=1 // pred_check_branch
      %84 = sbr.rel (0) target = $region21
    $region20: #{tpu_custom_call.1} parent=1 // pred_region
      %s86 = ssub.s32 128, 128
      %87 = vsyncadd [#allocation4], %s86
      %s89 = sshll.u32 [#allocation7], 4
      %s90 = int_to_ptr.vmem [resolvable:$true] %s89
      %92 = dma.vmem_to_hbm [thread:$0]  %s90, 128, %s2, [#allocation4]
    $region21: #{tpu_custom_call.1} parent=1 // pred_fallthru
      _
    // Predicated region
    $region22: #{tpu_custom_call.1} parent=1 // pred_check
      _
    $region23: #{tpu_custom_call.1} parent=1 // pred_check_branch
      %94 = sbr.rel (0) target = $region25
    $region24: #{tpu_custom_call.1} parent=1 // pred_region
      %s96 = ssub.s32 128, 128
      %97 = vsyncadd [#allocation9], %s96
      %s99 = sshll.u32 [#allocation8], 4
      %s100 = int_to_ptr.vmem [resolvable:$true] %s99
      %102 = dma.vmem_to_hbm [thread:$0]  %s100, 128, %s3, [#allocation9]
    $region25: #{tpu_custom_call.1} parent=1 // pred_fallthru
      _
    // Predicated region
    $region26: #{tpu_custom_call.1} parent=1 // pred_check
      _
    $region27: #{tpu_custom_call.1} parent=1 // pred_check_branch
      %104 = sbr.rel (0) target = $region29
    $region28: #{tpu_custom_call.1} parent=1 // pred_region
      %105 = dma.done [#allocation4], 128
    $region29: #{tpu_custom_call.1} parent=1 // pred_fallthru
      _
    // Predicated region
    $region30: #{tpu_custom_call.1} parent=1 // pred_check
      _
    $region31: #{tpu_custom_call.1} parent=1 // pred_check_branch
      %107 = sbr.rel (0) target = $region33
    $region32: #{tpu_custom_call.1} parent=1 // pred_region
      %108 = dma.done [#allocation9], 128
    $region33: #{tpu_custom_call.1} parent=1 // pred_fallthru
      _
    %109 = vsyncpa [#allocation3], 1
    %110 = vsyncpa [#allocation6], 1
    %111 = vsyncpa [#allocation4], 1
    %112 = vsyncpa [#allocation9], 1

</llo_original>
